<compile_context>
chip_gen: v6e
topology: v6e:2x2x1
jax: 0.10.0
libtpu: 0.0.40
codegen_flags: <defaults>
</compile_context>

<pallas_src>
import jax
import jax.numpy as jnp
from jax.experimental import pallas as pl
from jax.experimental.pallas import tpu as pltpu

_VMEM_LIMIT_BYTES = 32 * 1024 * 1024   # explicit scoped-VMEM limit (works on v5e/v6e/v7x)
_TILE_VMEM_BUDGET = 16 * 1024 * 1024   # double-buffered tiles must fit under this
_MAX_TILE_N = 1024


def _choose_tile_n(n, bytes_per_row):
    # ~2 live copies of every tile (double-buffered pipeline)
    max_rows = max(8, _TILE_VMEM_BUDGET // (2 * bytes_per_row))
    tile = int(min(n, max_rows, _MAX_TILE_N))
    if tile >= 128:
        tile = (tile // 128) * 128      # lane-dense per-row-loss stores
    else:
        tile = max(8, (tile // 8) * 8)  # keep sublane alignment for tiny N
    return tile


def _nll_int_kernel(x_ref, lbl_ref, loss_ref):
    """x: (tile_n, C) probabilities, lbl: (tile_n, 1) int32, loss: (1, tile_n)."""
    x = jnp.clip(x_ref[...].astype(jnp.float32), 1e-6, 1.0)
    tile_n, c = x.shape
    col = jax.lax.broadcasted_iota(jnp.int32, (tile_n, c), 1)
    # one-hot target followed by clamp(., 1e-4, 1.0), folded into one select
    y = jnp.where(col == lbl_ref[...], jnp.float32(1.0), jnp.float32(1e-4))
    row_loss = -jnp.sum(y * jnp.log(x), axis=-1)              # (tile_n,)
    loss_ref[...] = row_loss[None, :].astype(loss_ref.dtype)  # lane-major store


def _nll_dense_kernel(x_ref, y_ref, loss_ref):
    """x, y: (tile_n, C) floats, loss: (1, tile_n)."""
    x = jnp.clip(x_ref[...].astype(jnp.float32), 1e-6, 1.0)
    y = jnp.clip(y_ref[...].astype(jnp.float32), 1e-4, 1.0)
    row_loss = -jnp.sum(y * jnp.log(x), axis=-1)
    loss_ref[...] = row_loss[None, :].astype(loss_ref.dtype)


def nll_loss(x, y, reduction="mean"):
    """Pallas NLLoss forward.

    x: (N, C) float probabilities.
    y: (N,) integer labels  OR  (N, C) float targets (same shape as x).
    """
    n, c = x.shape
    dense_target = (y.shape == x.shape)
    x_bytes = jnp.dtype(x.dtype).itemsize

    if dense_target:
        bytes_per_row = 2 * c * x_bytes + 4          # x tile + y tile + loss row
    else:
        bytes_per_row = c * x_bytes + 4 + 4          # x tile + int32 label + loss row

    # TODO(synk): for vocab-scale C, add a second grid axis over C with a VMEM
    # row-sum accumulator instead of a full (tile_n, C) block per step.
    tile_n = _choose_tile_n(n, bytes_per_row)
    num_tiles = -(-n // tile_n)
    n_pad = num_tiles * tile_n

    if n_pad != n:  # pad rows; padded rows are computed then sliced away
        x = jnp.pad(x, ((0, n_pad - n), (0, 0)), constant_values=1.0)

    out_shape = jax.ShapeDtypeStruct((num_tiles, tile_n), x.dtype)
    out_spec = pl.BlockSpec((1, tile_n), lambda i: (i, 0))
    x_spec = pl.BlockSpec((tile_n, c), lambda i: (i, 0))
    cparams = pltpu.CompilerParams(
        dimension_semantics=("parallel",),           # tiles are independent
        vmem_limit_bytes=_VMEM_LIMIT_BYTES,
    )

    if dense_target:
        y = y.astype(x.dtype)
        if n_pad != n:
            y = jnp.pad(y, ((0, n_pad - n), (0, 0)))
        per_tile = pl.pallas_call(
            _nll_dense_kernel,
            out_shape=out_shape,
            grid_spec=pltpu.PrefetchScalarGridSpec(
                num_scalar_prefetch=0,
                grid=(num_tiles,),
                in_specs=[x_spec, pl.BlockSpec((tile_n, c), lambda i: (i, 0))],
                out_specs=out_spec,
            ),
            compiler_params=cparams,
        )(x, y)
    else:
        lbl = y.astype(jnp.int32).reshape(n, 1)
        if n_pad != n:
            lbl = jnp.pad(lbl, ((0, n_pad - n), (0, 0)))
        per_tile = pl.pallas_call(
            _nll_int_kernel,
            out_shape=out_shape,
            grid_spec=pltpu.PrefetchScalarGridSpec(
                num_scalar_prefetch=0,
                grid=(num_tiles,),
                in_specs=[x_spec, pl.BlockSpec((tile_n, 1), lambda i: (i, 0))],
                out_specs=out_spec,
            ),
            compiler_params=cparams,
        )(x, lbl)

    per_row = per_tile.reshape(-1)[:n]
    if reduction == "mean":
        return per_row.mean()
    return per_row


def _nll_ref(x, y, reduction="mean"):
    n, c = x.shape
    if y.shape != x.shape:
        y = jax.nn.one_hot(y, c, dtype=x.dtype)
    y = y.astype(x.dtype)
    x = jnp.clip(x, 1e-6, 1.0)
    y = jnp.clip(y, 1e-4, 1.0)
    loss = -(y * jnp.log(x)).sum(-1)
    return loss.mean() if reduction == "mean" else loss


if __name__ == "__main__":
    key = jax.random.PRNGKey(0)
    kx, ky = jax.random.split(key)

    N, C = 16, 32
    logits = jax.random.normal(kx, (N, C), dtype=jnp.float32)
    x = jax.nn.softmax(logits, axis=-1)                       # probabilities
    y = jax.random.randint(ky, (N,), 0, C, dtype=jnp.int32)   # integer labels

    # integer-label path, 'mean' reduction (one-hot built in-kernel)
    out = jax.block_until_ready(nll_loss(x, y, reduction="mean"))
    ref = _nll_ref(x, y, reduction="mean")
    assert jnp.allclose(out, ref, rtol=1e-5, atol=1e-5), (out, ref)

    # dense (same-shape) target path, 'none' reduction
    y_dense = jax.nn.one_hot(y, C, dtype=x.dtype)
    out_none = jax.block_until_ready(nll_loss(x, y_dense, reduction="none"))
    ref_none = _nll_ref(x, y_dense, reduction="none")
    assert jnp.allclose(out_none, ref_none, rtol=1e-5, atol=1e-5)

    # non-divisible N exercises the row-padding / multi-tile path
    N2 = 12
    x2 = jax.nn.softmax(jax.random.normal(kx, (N2, C), dtype=jnp.float32), -1)
    y2 = jax.random.randint(ky, (N2,), 0, C, dtype=jnp.int32)
    out2 = jax.block_until_ready(nll_loss(x2, y2, reduction="none"))
    ref2 = _nll_ref(x2, y2, reduction="none")
    assert jnp.allclose(out2, ref2, rtol=1e-5, atol=1e-5)

    print("KERNEL_OK")
</pallas_src>

<mosaic_0001>
module attributes {stable_mosaic.version = 11 : i64} {
  func.func @_nll_int_kernel(%arg0: i32, %arg1: memref<16x32xf32, #tpu.memory_space<vmem>>, %arg2: memref<16x1xi32, #tpu.memory_space<vmem>>, %arg3: memref<1x16xf32, #tpu.memory_space<vmem>>) attributes {dimension_semantics = [#tpu.dimension_semantics<parallel>], iteration_bounds = array<i64: 1>, scalar_prefetch = 0 : i64, scratch_operands = 0 : i64, tpu.core_type = #tpu.core_type<tc>, window_params = [{transform_indices = @transform_0, window_bounds = array<i64: 16, 32>}, {transform_indices = @transform_1, window_bounds = array<i64: 16, 1>}, {transform_indices = @transform_2, window_bounds = array<i64: 1, 16>}]} {
    %c0 = arith.constant 0 : index
    %c0_0 = arith.constant 0 : index
    %0 = vector.load %arg1[%c0, %c0_0] : memref<16x32xf32, #tpu.memory_space<vmem>>, vector<16x32xf32>
    %cst = arith.constant 9.99999997E-7 : f32
    %cst_1 = arith.constant 1.000000e+00 : f32
    %1 = vector.broadcast %cst : f32 to vector<16x32xf32>
    %2 = arith.maximumf %1, %0 : vector<16x32xf32>
    %3 = vector.broadcast %cst_1 : f32 to vector<16x32xf32>
    %4 = arith.minimumf %3, %2 : vector<16x32xf32>
    %5 = tpu.iota {dimensions = array<i32: 1>} : vector<16x32xi32>
    %c0_2 = arith.constant 0 : index
    %c0_3 = arith.constant 0 : index
    %6 = vector.load %arg2[%c0_2, %c0_3] : memref<16x1xi32, #tpu.memory_space<vmem>>, vector<16x1xi32>
    %7 = vector.broadcast %6 : vector<16x1xi32> to vector<16x32xi32>
    %8 = arith.cmpi eq, %5, %7 : vector<16x32xi32>
    %cst_4 = arith.constant 1.000000e+00 : f32
    %cst_5 = arith.constant 9.99999974E-5 : f32
    %9 = vector.broadcast %cst_4 : f32 to vector<16x32xf32>
    %10 = vector.broadcast %cst_5 : f32 to vector<16x32xf32>
    %11 = arith.select %8, %9, %10 : vector<16x32xi1>, vector<16x32xf32>
    %12 = math.log %4 : vector<16x32xf32>
    %13 = arith.mulf %11, %12 : vector<16x32xf32>
    %cst_6 = arith.constant dense<0.000000e+00> : vector<16xf32>
    %14 = vector.multi_reduction <add>, %13, %cst_6 [1] : vector<16x32xf32> to vector<16xf32>
    %cst_7 = arith.constant 0.000000e+00 : f32
    %15 = vector.broadcast %cst_7 : f32 to vector<16xf32>
    %16 = arith.subf %15, %14 : vector<16xf32>
    %17 = vector.shape_cast %16 : vector<16xf32> to vector<1x16xf32>
    %c0_8 = arith.constant 0 : index
    %c0_9 = arith.constant 0 : index
    %18 = vector.load %arg3[%c0_8, %c0_9] : memref<1x16xf32, #tpu.memory_space<vmem>>, vector<1x16xf32>
    tpu.vector_store %arg3[%c0_8, %c0_9], %17 {strides = array<i32>} : memref<1x16xf32, #tpu.memory_space<vmem>>, vector<1x16xf32>,
    return
  }
  func.func @transform_0(%arg0: i32) -> (i32, i32) {
    %c0_i32 = arith.constant 0 : i32
    %c0_i32_0 = arith.constant 0 : i32
    return %arg0, %c0_i32 : i32, i32
  }
  func.func @transform_1(%arg0: i32) -> (i32, i32) {
    %c0_i32 = arith.constant 0 : i32
    %c0_i32_0 = arith.constant 0 : i32
    return %arg0, %c0_i32 : i32, i32
  }
  func.func @transform_2(%arg0: i32) -> (i32, i32) {
    %c0_i32 = arith.constant 0 : i32
    %c0_i32_0 = arith.constant 0 : i32
    return %arg0, %c0_i32 : i32, i32
  }
}

</mosaic_0001>

<llo_original>
// kernel: tpu_custom_call.1
$region0: #{tpu_custom_call.1}
  #allocation0 [shape = 'u32[]', space=smem, size = 0x4, offset = 0x4, fixed_abs, tag = 'smem constant byte address 0x4 - core index']
  #allocation1 [shape = 'u32[144,128]{1,0:T(1,128)}', space=vmem, size = 0x12000, scoped, tag = 'internal scratch']
  %s0 = inlined_call_operand.vmem [shape: f32[16,32], index: 0, kind: input, shape index: {}]
  %s1 = inlined_call_operand.vmem [shape: s32[16,1], index: 1, kind: input, shape index: {}]
  %s2 = inlined_call_operand.hbm [shape: f32[1,16], index: 2, kind: output, shape index: {}]
  %s3 = sld [smem:[#allocation0]]
  $region18: #{tpu_custom_call.1} parent=0
    _
  %s5 = ssub.s32 1, %s3
  %s6 = scalar_select 0, %s5, %s3
  $region1: #{tpu_custom_call.1} parent=0
    #allocation2 [shape = 'u8[512]{0}', space=vmem, size = 0x400, scoped, tag = 'output window, operand 0, single buffered']
    #allocation3 [shape = 's32[1]{0}', space=sflag, size = 0x4, scoped, tag = 'scoped memory for tpu_custom_call.1']
    %7 = vsyncpa [#allocation3], 0
    // Predicated region
    $region2: #{tpu_custom_call.1} parent=1 // pred_check
      _
    $region3: #{tpu_custom_call.1} parent=1 // pred_check_branch
      %9 = sbr.rel (0) target = $region5
    $region4: #{tpu_custom_call.1} parent=1 // pred_region
      _
    $region5: #{tpu_custom_call.1} parent=1 // pred_fallthru
      _
    // Predicated region
    $region6: #{tpu_custom_call.1} parent=1 // pred_check
      _
    $region7: #{tpu_custom_call.1} parent=1 // pred_check_branch
      %11 = sbr.rel (0) target = $region9
    $region8: #{tpu_custom_call.1} parent=1 // pred_region
      _
    $region9: #{tpu_custom_call.1} parent=1 // pred_fallthru
      _
    %v12 = vld [vmem:[%s0] sm:$0xff]
    %v13 = vld [vmem:[%s0 + $0x8] sm:$0xff]
    %v14 = vmax.f32 %v12, 1e-06
    %v15 = vmax.f32 %v13, 1e-06
    %v16 = vmin.f32 %v14, 1.0
    %v17 = vmin.f32 %v15, 1.0
    %v18 = vlaneseq
    %v19 = vand.u32 %v18, 127
    %v20 = vld [vmem:[%s1] sm:$0xff]
    %v21 = vld [vmem:[%s1 + $0x8] sm:$0xff]
    %22 = vset.pattern.permute.xlu0 0
    %23 = vperm.xlu0 %22, %v20
    %v24 = vpop.permute.xlu0 %23
    %25 = vset.pattern.permute.xlu0 0
    %26 = vperm.xlu0 %25, %v21
    %v27 = vpop.permute.xlu0 %26
    %vm28 = vcmp.eq.s32.totalorder %v19, %v24
    %vm29 = vcmp.eq.s32.totalorder %v19, %v27
    %v30 = vsel %vm28, 1.0, 0.0001
    %v31 = vsel %vm29, 1.0, 0.0001
    %v32 = vlog2.pop %v16
    %v33 = vmul.f32 %v32, 0.6931472
    %v34 = vlog2.pop %v17
    %v35 = vmul.f32 %v34, 0.6931472
    %v36 = vmul.f32 %v30, %v33
    %v37 = vmul.f32 %v31, %v35
    %vm38 = vcmask 261120
    %v39 = vsel %vm38, %v36, 0.0
    %40 = vadd.xlane.f32.xlu0 %v39
    %v41 = vpop.xlane.xlu0 %40
    %v42 = vsel %vm38, %v37, 0.0
    %43 = vadd.xlane.f32.xlu0 %v42
    %v44 = vpop.xlane.xlu0 %43
    %v45 = vsub.f32 0.0, %v41
    %v46 = vsub.f32 0.0, %v44
    %v49 = vlaneseq
    %v50 = vshrl.u32 %v49, 7
    %v51 = vsub.s32 %v19, %v50
    %v52 = vrot.slane %v45, %v51
    %v53 = vadd.s32 %v19, 4294967288
    %v54 = vlaneseq
    %v55 = vshrl.u32 %v54, 7
    %v56 = vsub.s32 %v53, %v55
    %v57 = vrot.slane %v46, %v56
    %vm58 = vcmask 130112
    %v59 = vsel %vm58, %v57, %v52
    %vm61 = vcmask 122880
    %62 = vst.msk [vmem:[#allocation2] sm:$0x1] %vm61, %v59
    // Predicated region
    $region10: #{tpu_custom_call.1} parent=1 // pred_check
      _
    $region11: #{tpu_custom_call.1} parent=1 // pred_check_branch
      %64 = sbr.rel (0) target = $region13
    $region12: #{tpu_custom_call.1} parent=1 // pred_region
      %s66 = ssub.s32 16, 16
      %67 = vsyncadd [#allocation3], %s66
      %s69 = sshll.u32 [#allocation2], 4
      %s70 = int_to_ptr.vmem [resolvable:$true] %s69
      %72 = dma.vmem_to_hbm [thread:$0]  %s70, 16, %s2, [#allocation3]
    $region13: #{tpu_custom_call.1} parent=1 // pred_fallthru
      _
    // Predicated region
    $region14: #{tpu_custom_call.1} parent=1 // pred_check
      _
    $region15: #{tpu_custom_call.1} parent=1 // pred_check_branch
      %74 = sbr.rel (0) target = $region17
    $region16: #{tpu_custom_call.1} parent=1 // pred_region
      %75 = dma.done [#allocation3], 16
    $region17: #{tpu_custom_call.1} parent=1 // pred_fallthru
      _
    %76 = vsyncpa [#allocation3], 1

</llo_original>
